<compile_context>
chip_gen: v5e
topology: v5e:2x2
jax: 0.10.0
libtpu: 0.0.40
codegen_flags: <defaults>
</compile_context>

<pallas_src>
import functools

import jax
import jax.numpy as jnp
from jax import lax
from jax.experimental import pallas as pl
from jax.experimental.pallas import tpu as pltpu

LANE = 128
SUBLANE = 8
INNER_CHUNK_ROWS = 512      # rows per in-kernel compute chunk (bounds VMEM temps)
MAX_BLOCK_ROWS = 32768      # hard cap: 32 MiB f32 step payload (2 inputs)


def _vmem_capacity_bytes():
    """Per-TensorCore VMEM capacity, with a conservative fallback (v7x size)."""
    try:
        info = pltpu.get_tpu_info()
        cap = int(getattr(info, "vmem_capacity_bytes", 0) or 0)
        if cap > 0:
            return cap
    except Exception:
        pass
    return 64 * 1024 * 1024


def _lognormal_sum_kernel(pred_ref, mu_ref, out_ref, acc_ref, *,
                          block_rows, chunk_rows, total_rows, needs_mask):
    """Accumulates sum((log(pred) - mu)^2) over the whole grid into out_ref."""
    b = pl.program_id(0)
    n_chunks = block_rows // chunk_rows
    block_start_row = b * block_rows

    @pl.when(b == 0)
    def _():
        acc_ref[...] = jnp.zeros_like(acc_ref)

    def chunk_update(r0, masked):
        # Widen in-kernel (HBM may hold bf16); all arithmetic in f32.
        x = pred_ref[pl.ds(r0, chunk_rows), :].astype(jnp.float32)
        m = mu_ref[pl.ds(r0, chunk_rows), :].astype(jnp.float32)
        d = jnp.log(x) - m
        sq = d * d
        if masked:
            # Full-width iota (no skinny (rows,1) vregs); where() is a select,
            # so NaN/Inf from out-of-bounds garbage rows is dropped, not mixed.
            rid = (block_start_row + r0
                   + lax.broadcasted_iota(jnp.int32, (chunk_rows, LANE), 0))
            sq = jnp.where(rid < total_rows, sq, 0.0)
        # Pure-VPU partial reduction into a single-vreg accumulator.
        acc_ref[...] = acc_ref[...] + sq.reshape(
            chunk_rows // SUBLANE, SUBLANE, LANE).sum(axis=0)

    def accumulate(masked):
        if n_chunks == 1:
            chunk_update(0, masked)
        else:
            def body(ci, carry):
                chunk_update(pl.multiple_of(ci * chunk_rows, SUBLANE), masked)
                return carry
            lax.fori_loop(0, n_chunks, body, 0)

    if needs_mask:
        # Only the last logical block can be ragged; mask only there.
        is_last = b == pl.num_programs(0) - 1

        @pl.when(is_last)
        def _():
            accumulate(True)

        @pl.when(b != pl.num_programs(0) - 1)
        def _():
            accumulate(False)
    else:
        accumulate(False)

    @pl.when(b == pl.num_programs(0) - 1)
    def _():
        # Single cross-lane/sublane reduction of one vreg, once per call.
        out_ref[...] = jnp.sum(acc_ref[...]).reshape(1, 1)


def lognormal_loss(predictions, mu_true, sigma_true):
    """Pallas TPU implementation of LogNormalLoss.forward."""
    assert predictions.shape == mu_true.shape
    out_dtype = jnp.promote_types(predictions.dtype, mu_true.dtype)
    n = predictions.size

    pred_flat = predictions.reshape(-1)
    mu_flat = mu_true.reshape(-1)

    rows = n // LANE
    tail = n - rows * LANE

    total = jnp.float32(0.0)

    if rows >= SUBLANE:
        itemsize = jnp.dtype(predictions.dtype).itemsize

        # ---- generation-aware block / VMEM budget ---------------------------
        vmem_cap = _vmem_capacity_bytes()
        vmem_limit = max(32 << 20, min(int(vmem_cap * 0.70), 100 << 20))
        # 2 inputs x 2 pipeline buffers per row of LANE elements.
        per_row_bytes = 2 * 2 * LANE * itemsize
        buffer_budget = vmem_limit - (6 << 20)        # headroom for temps + acc
        cap_rows = max(SUBLANE, min(buffer_budget // per_row_bytes, MAX_BLOCK_ROWS))

        block_rows = min(cap_rows, rows)
        block_rows = max(SUBLANE, (block_rows // SUBLANE) * SUBLANE)
        if block_rows >= INNER_CHUNK_ROWS:
            block_rows = (block_rows // INNER_CHUNK_ROWS) * INNER_CHUNK_ROWS
            chunk_rows = INNER_CHUNK_ROWS
        else:
            chunk_rows = block_rows
        nblocks = pl.cdiv(rows, block_rows)
        needs_mask = (rows % block_rows) != 0

        # Lane-dense 2-D view of the aligned prefix (reshape only; no pad).
        if tail:
            pred2d = pred_flat[: rows * LANE].reshape(rows, LANE)
            mu2d = mu_flat[: rows * LANE].reshape(rows, LANE)
        else:
            pred2d = pred_flat.reshape(rows, LANE)
            mu2d = mu_flat.reshape(rows, LANE)

        kernel = functools.partial(
            _lognormal_sum_kernel,
            block_rows=block_rows,
            chunk_rows=chunk_rows,
            total_rows=rows,
            needs_mask=needs_mask,
        )

        cost = pl.CostEstimate(
            flops=3 * rows * LANE,
            transcendentals=rows * LANE,
            bytes_accessed=2 * rows * LANE * itemsize + 4,
        )

        partial_sum = pl.pallas_call(
            kernel,
            out_shape=jax.ShapeDtypeStruct((1, 1), jnp.float32),
            grid_spec=pltpu.PrefetchScalarGridSpec(
                num_scalar_prefetch=0,
                grid=(nblocks,),
                in_specs=[
                    pl.BlockSpec((block_rows, LANE), lambda b: (b, 0)),
                    pl.BlockSpec((block_rows, LANE), lambda b: (b, 0)),
                ],
                out_specs=pl.BlockSpec((1, 1), lambda b: (0, 0)),
                scratch_shapes=[pltpu.VMEM((SUBLANE, LANE), jnp.float32)],
            ),
            compiler_params=pltpu.CompilerParams(
                dimension_semantics=("arbitrary",),
                vmem_limit_bytes=vmem_limit,
            ),
            cost_estimate=cost,
        )(pred2d, mu2d)
        total = partial_sum[0, 0]
    else:
        # Degenerate tiny input (< 1024 elements): plain JAX handles it all.
        tail = n

    if tail:
        p_tail = pred_flat[n - tail:].astype(jnp.float32)
        m_tail = mu_flat[n - tail:].astype(jnp.float32)
        d = jnp.log(p_tail) - m_tail
        total = total + jnp.sum(d * d)

    # sigma / N scaling outside the kernel (traced sigma never recompiles).
    sigma = jnp.asarray(sigma_true, jnp.float32)
    loss = total * (0.5 / (sigma * sigma)) / jnp.float32(n)
    return loss.astype(out_dtype)


if __name__ == "__main__":
    key = jax.random.PRNGKey(0)
    k1, k2 = jax.random.split(key)

    # Small shapes: batch=2, channels=4, spatial=16x16.
    shape = (2, 4, 16, 16)
    # predictions must be positive for log().
    predictions = jax.random.uniform(k1, shape, jnp.float32, minval=0.1, maxval=2.0)
    mu_true = jax.random.normal(k2, shape, jnp.float32)
    sigma_true = 0.7

    loss = lognormal_loss(predictions, mu_true, sigma_true)
    loss = jax.block_until_ready(loss)

    # Reference check in plain JAX.
    ref = jnp.mean(0.5 * (jnp.log(predictions) - mu_true) ** 2 / sigma_true ** 2)
    assert jnp.allclose(loss, ref, rtol=1e-5, atol=1e-6), (loss, ref)

    print("KERNEL_OK")
</pallas_src>

<mosaic_0001>
module attributes {stable_mosaic.version = 11 : i64} {
  func.func @_lognormal_sum_kernel(%arg0: i32, %arg1: memref<16x128xf32, #tpu.memory_space<vmem>>, %arg2: memref<16x128xf32, #tpu.memory_space<vmem>>, %arg3: memref<1x1xf32, #tpu.memory_space<vmem>>, %arg4: memref<8x128xf32, #tpu.memory_space<vmem>>) attributes {dimension_semantics = [#tpu.dimension_semantics<arbitrary>], iteration_bounds = array<i64: 1>, scalar_prefetch = 0 : i64, scratch_operands = 1 : i64, tpu.core_type = #tpu.core_type<tc>, window_params = [{transform_indices = @transform_0, window_bounds = array<i64: 16, 128>}, {transform_indices = @transform_1, window_bounds = array<i64: 16, 128>}, {pipeline_mode = #tpu.pipeline_mode<synchronous>, transform_indices = @transform_2, window_bounds = array<i64: 1, 1>}]} {
    %c0_i32 = arith.constant 0 : i32
    %0 = arith.cmpi eq, %arg0, %c0_i32 : i32
    %1 = arith.extui %0 : i1 to i32
    %c0_i32_0 = arith.constant 0 : i32
    %2 = arith.cmpi ne, %1, %c0_i32_0 : i32
    scf.if %2 {
      %cst_10 = arith.constant 0.000000e+00 : f32
      %16 = vector.broadcast %cst_10 : f32 to vector<8x128xf32>
      %c0_11 = arith.constant 0 : index
      %c0_12 = arith.constant 0 : index
      %17 = vector.load %arg4[%c0_11, %c0_12] : memref<8x128xf32, #tpu.memory_space<vmem>>, vector<8x128xf32>
      tpu.vector_store %arg4[%c0_11, %c0_12], %16 {strides = array<i32>} : memref<8x128xf32, #tpu.memory_space<vmem>>, vector<8x128xf32>,
    } else {
    }
    %c0 = arith.constant 0 : index
    %c0_1 = arith.constant 0 : index
    %3 = vector.load %arg1[%c0, %c0_1] : memref<16x128xf32, #tpu.memory_space<vmem>>, vector<16x128xf32>
    %c0_2 = arith.constant 0 : index
    %c0_3 = arith.constant 0 : index
    %4 = vector.load %arg2[%c0_2, %c0_3] : memref<16x128xf32, #tpu.memory_space<vmem>>, vector<16x128xf32>
    %5 = math.log %3 : vector<16x128xf32>
    %6 = arith.subf %5, %4 : vector<16x128xf32>
    %7 = arith.mulf %6, %6 : vector<16x128xf32>
    %c0_4 = arith.constant 0 : index
    %c0_5 = arith.constant 0 : index
    %8 = vector.load %arg4[%c0_4, %c0_5] : memref<8x128xf32, #tpu.memory_space<vmem>>, vector<8x128xf32>
    %9 = vector.shape_cast %7 : vector<16x128xf32> to vector<2x8x128xf32>
    %cst = arith.constant dense<0.000000e+00> : vector<8x128xf32>
    %10 = vector.multi_reduction <add>, %9, %cst [0] : vector<2x8x128xf32> to vector<8x128xf32>
    %11 = arith.addf %8, %10 : vector<8x128xf32>
    %c0_6 = arith.constant 0 : index
    %c0_7 = arith.constant 0 : index
    %12 = vector.load %arg4[%c0_6, %c0_7] : memref<8x128xf32, #tpu.memory_space<vmem>>, vector<8x128xf32>
    tpu.vector_store %arg4[%c0_6, %c0_7], %11 {strides = array<i32>} : memref<8x128xf32, #tpu.memory_space<vmem>>, vector<8x128xf32>,
    %c0_i32_8 = arith.constant 0 : i32
    %13 = arith.cmpi eq, %arg0, %c0_i32_8 : i32
    %14 = arith.extui %13 : i1 to i32
    %c0_i32_9 = arith.constant 0 : i32
    %15 = arith.cmpi ne, %14, %c0_i32_9 : i32
    scf.if %15 {
      %c0_10 = arith.constant 0 : index
      %c0_11 = arith.constant 0 : index
      %16 = vector.load %arg4[%c0_10, %c0_11] : memref<8x128xf32, #tpu.memory_space<vmem>>, vector<8x128xf32>
      %17 = vector.shape_cast %16 : vector<8x128xf32> to vector<1x8x128xf32>
      %cst_12 = arith.constant dense<0.000000e+00> : vector<1xf32>
      %18 = vector.multi_reduction <add>, %17, %cst_12 [1, 2] : vector<1x8x128xf32> to vector<1xf32>
      %19 = vector.shape_cast %18 : vector<1xf32> to vector<1x1x1xf32>
      %20 = vector.extract %19[0, 0, 0] : f32 from vector<1x1x1xf32>
      %21 = vector.broadcast %20 : f32 to vector<1x1xf32>
      %c0_13 = arith.constant 0 : index
      %c0_14 = arith.constant 0 : index
      %22 = vector.load %arg3[%c0_13, %c0_14] : memref<1x1xf32, #tpu.memory_space<vmem>>, vector<1x1xf32>
      tpu.vector_store %arg3[%c0_13, %c0_14], %21 {strides = array<i32>} : memref<1x1xf32, #tpu.memory_space<vmem>>, vector<1x1xf32>,
    } else {
    }
    return
  }
  func.func @transform_0(%arg0: i32) -> (i32, i32) {
    %c0_i32 = arith.constant 0 : i32
    %c0_i32_0 = arith.constant 0 : i32
    return %arg0, %c0_i32 : i32, i32
  }
  func.func @transform_1(%arg0: i32) -> (i32, i32) {
    %c0_i32 = arith.constant 0 : i32
    %c0_i32_0 = arith.constant 0 : i32
    return %arg0, %c0_i32 : i32, i32
  }
  func.func @transform_2(%arg0: i32) -> (i32, i32) {
    %c0_i32 = arith.constant 0 : i32
    %c0_i32_0 = arith.constant 0 : i32
    %c0_i32_1 = arith.constant 0 : i32
    return %c0_i32, %c0_i32_0 : i32, i32
  }
}

</mosaic_0001>

<llo_original>
// kernel: tpu_custom_call.1
$region0: #{tpu_custom_call.1}
  #allocation0 [shape = 'u32[]', space=smem, size = 0x4, offset = 0x4, fixed_abs, tag = 'smem constant byte address 0x4 - core index']
  #allocation1 [shape = 'u32[72,128]{1,0:T(1,128)}', space=vmem, size = 0x9000, scoped, tag = 'internal scratch']
  #allocation2 [shape = 'f32[8,128]{1,0:T(8,128)}', space=vmem, size = 0x1000, scoped, tag = 'scratch operand']
  %s0 = inlined_call_operand.hbm [shape: f32[16,128], index: 0, kind: input, shape index: {}]
  %s1 = inlined_call_operand.hbm [shape: f32[16,128], index: 1, kind: input, shape index: {}]
  %s2 = inlined_call_operand.hbm [shape: f32[1,1], index: 2, kind: output, shape index: {}]
  %s3 = sld [smem:[#allocation0]]
  $region34: #{tpu_custom_call.1} parent=0
    _
  %s5 = ssub.s32 1, %s3
  %s6 = scalar_select 0, %s5, %s3
  $region1: #{tpu_custom_call.1} parent=0
    #allocation3 [shape = 'u8[8192]{0}', space=vmem, size = 0x2000, scoped, tag = 'input window, operand 0, single buffered']
    #allocation4 [shape = 's32[1]{0}', space=sflag, size = 0x4, scoped, tag = 'scoped memory for tpu_custom_call.1']
    #allocation5 [shape = 's32[1]{0}', space=sflag, size = 0x4, scoped, tag = 'scoped memory for tpu_custom_call.1']
    #allocation6 [shape = 'u8[8192]{0}', space=vmem, size = 0x2000, scoped, tag = 'input window, operand 1, single buffered']
    #allocation7 [shape = 's32[1]{0}', space=sflag, size = 0x4, scoped, tag = 'scoped memory for tpu_custom_call.1']
    #allocation8 [shape = 'u8[512]{0}', space=vmem, size = 0x400, scoped, tag = 'output window, operand 0, single buffered']
    %7 = vsyncpa [#allocation4], 0
    %8 = vsyncpa [#allocation7], 0
    %9 = vsyncpa [#allocation5], 0
    // Predicated region
    $region2: #{tpu_custom_call.1} parent=1 // pred_check
      _
    $region3: #{tpu_custom_call.1} parent=1 // pred_check_branch
      %11 = sbr.rel (0) target = $region5
    $region4: #{tpu_custom_call.1} parent=1 // pred_region
      %13 = vsyncadd [#allocation4], 0
      %s14 = sshll.u32 %s0, 4
      %s15 = int_to_ptr.hbm [resolvable:$true] %s14
      %s16 = sshll.u32 [#allocation3], 4
      %s17 = int_to_ptr.vmem [resolvable:$true] %s16
      %22 = dma.hbm_to_vmem [thread:$0]  %s15, 256, %s17, [#allocation4], 128, 128, 8
    $region5: #{tpu_custom_call.1} parent=1 // pred_fallthru
      _
    // Predicated region
    $region6: #{tpu_custom_call.1} parent=1 // pred_check
      _
    $region7: #{tpu_custom_call.1} parent=1 // pred_check_branch
      %24 = sbr.rel (0) target = $region9
    $region8: #{tpu_custom_call.1} parent=1 // pred_region
      %26 = vsyncadd [#allocation7], 0
      %s27 = sshll.u32 %s1, 4
      %s28 = int_to_ptr.hbm [resolvable:$true] %s27
      %s29 = sshll.u32 [#allocation6], 4
      %s30 = int_to_ptr.vmem [resolvable:$true] %s29
      %35 = dma.hbm_to_vmem [thread:$0]  %s28, 256, %s30, [#allocation7], 128, 128, 8
    $region9: #{tpu_custom_call.1} parent=1 // pred_fallthru
      _
    // Predicated region
    $region10: #{tpu_custom_call.1} parent=1 // pred_check
      _
    $region11: #{tpu_custom_call.1} parent=1 // pred_check_branch
      %37 = sbr.rel (0) target = $region13
    $region12: #{tpu_custom_call.1} parent=1 // pred_region
      %39 = dma.done [#allocation4], 256
    $region13: #{tpu_custom_call.1} parent=1 // pred_fallthru
      _
    // Predicated region
    $region14: #{tpu_custom_call.1} parent=1 // pred_check
      _
    $region15: #{tpu_custom_call.1} parent=1 // pred_check_branch
      %41 = sbr.rel (0) target = $region17
    $region16: #{tpu_custom_call.1} parent=1 // pred_region
      %43 = dma.done [#allocation7], 256
    $region17: #{tpu_custom_call.1} parent=1 // pred_fallthru
      _
    %p44 = scmp.eq.s32.totalorder 0, 0
    // Predicated region
    $region18: #{tpu_custom_call.1} parent=1 // pred_check
      %p45 = pneg %p44
    $region19: #{tpu_custom_call.1} parent=1 // pred_check_branch
      %47 = sbr.rel (%p45) target = $region21
    $region20: #{tpu_custom_call.1} parent=1 // pred_region
      %48 = vst [vmem:[#allocation2] sm:$0xff] 0.0
    $region21: #{tpu_custom_call.1} parent=1 // pred_fallthru
      _
    %v49 = vld [vmem:[#allocation3] sm:$0xff]
    %v50 = vld [vmem:[#allocation3 + $0x8] sm:$0xff]
    %v51 = vld [vmem:[#allocation6] sm:$0xff]
    %v52 = vld [vmem:[#allocation6 + $0x8] sm:$0xff]
    %v53 = vlog2.pop %v49
    %v54 = vmul.f32 %v53, 0.6931472
    %v55 = vlog2.pop %v50
    %v56 = vmul.f32 %v55, 0.6931472
    %v57 = vsub.f32 %v54, %v51
    %v58 = vsub.f32 %v56, %v52
    %v59 = vmul.f32 %v57, %v57
    %v60 = vmul.f32 %v58, %v58
    %v61 = vld [vmem:[#allocation2] sm:$0xff]
    %v62 = vadd.f32 %v59, %v60
    %v63 = vadd.f32 %v61, %v62
    %64 = vst [vmem:[#allocation2] sm:$0xff] %v63
    // Predicated region
    $region22: #{tpu_custom_call.1} parent=1 // pred_check
      %p65 = pneg %p44
    $region23: #{tpu_custom_call.1} parent=1 // pred_check_branch
      %67 = sbr.rel (%p65) target = $region25
    $region24: #{tpu_custom_call.1} parent=1 // pred_region
      %v68 = vld [vmem:[#allocation2] sm:$0xff]
      %69 = vadd.xlane.f32.xlu0 %v68
      %v70 = vpop.xlane.xlu0 %69
      %v71 = vrot.slane %v70, 4
      %v72 = vadd.f32 %v70, %v71
      %v73 = vrot.slane %v72, 2
      %v74 = vadd.f32 %v72, %v73
      %v75 = vrot.slane %v74, 1
      %v76 = vadd.f32 %v74, %v75
      %s77 = vtos %v76
      %v78 = vstv %s77
      %vm79 = vcmask 0
      %80 = vst.msk [vmem:[#allocation8] sm:$0x1] %vm79, %v78
    $region25: #{tpu_custom_call.1} parent=1 // pred_fallthru
      _
    // Predicated region
    $region26: #{tpu_custom_call.1} parent=1 // pred_check
      _
    $region27: #{tpu_custom_call.1} parent=1 // pred_check_branch
      %82 = sbr.rel (0) target = $region29
    $region28: #{tpu_custom_call.1} parent=1 // pred_region
      %84 = vsyncadd [#allocation5], 0
      %s86 = sshll.u32 [#allocation8], 4
      %s87 = int_to_ptr.vmem [resolvable:$true] %s86
      %s88 = sshll.u32 %s2, 4
      %s89 = int_to_ptr.hbm [resolvable:$true] %s88
      %91 = dma.vmem_to_hbm [thread:$0]  %s87, 16, %s89, [#allocation5]
    $region29: #{tpu_custom_call.1} parent=1 // pred_fallthru
      _
    // Predicated region
    $region30: #{tpu_custom_call.1} parent=1 // pred_check
      _
    $region31: #{tpu_custom_call.1} parent=1 // pred_check_branch
      %93 = sbr.rel (0) target = $region33
    $region32: #{tpu_custom_call.1} parent=1 // pred_region
      %95 = dma.done [#allocation5], 16
    $region33: #{tpu_custom_call.1} parent=1 // pred_fallthru
      _
    %96 = vsyncpa [#allocation4], 1
    %97 = vsyncpa [#allocation7], 1
    %98 = vsyncpa [#allocation5], 1

</llo_original>
